<compile_context>
chip_gen: v7x
topology: tpu7x:2x2x1
jax: 0.10.0
libtpu: 0.0.40
codegen_flags: <defaults>
</compile_context>

<pallas_src>
import jax
import jax.numpy as jnp
from jax import lax
from jax.experimental import pallas as pl
from jax.experimental.pallas import tpu as pltpu


def _round_up(x, m):
    return ((x + m - 1) // m) * m


def _cdiv(a, b):
    return (a + b - 1) // b


def _choose_tm(M, d_model, d_inp, vmem_budget_bytes=24 << 20):
    """Row-tile: largest multiple of 128 (<= 8192) whose double-buffered f32 footprint
    fits the budget; capped so the grid has >= 2 steps (v7x megacore) while keeping
    tm >= 512 to amortize the fixed per-grid-step overhead."""
    def footprint(t):
        return 2 * 4 * t * (d_model + d_inp) + 4 * 128 * 128  # in/out tiles + weight

    tm = 8192
    while tm > 512 and footprint(tm) > vmem_budget_bytes:
        tm //= 2
    if M >= 1024:
        # Leave at least 2 grid steps so ("parallel",) can use both v7x TensorCores.
        tm = min(tm, max(512, _round_up(_cdiv(M, 2), 128)))
    tm = min(tm, _round_up(M, 128))   # don't over-tile tiny inputs
    return max(tm, 128)


def _packed_weight(weight, g):
    """Block-diagonal expansion of W.T: shape (g*d_inp, g*d_model) = (K, 128).
    Row j*d_inp + k holds W[:, k] in lanes [j*d_model, (j+1)*d_model)."""
    d_model, d_inp = weight.shape
    wT = weight.T
    wp = jnp.zeros((g * d_inp, g * d_model), dtype=weight.dtype)
    for j in range(g):
        wp = wp.at[j * d_inp:(j + 1) * d_inp, j * d_model:(j + 1) * d_model].set(wT)
    return wp


def _tfe_rows_kernel(wT_ref, x_ref, o_ref):
    # wT_ref: (d_inp, d_model)  W.T, resident across grid steps
    # x_ref : (tm, d_inp)       natural row-major x tile
    # o_ref : (tm, d_model)     natural row-major y tile (lane-dense if d_model % 128 == 0)
    x = x_ref[...].astype(jnp.float32)
    wT = wT_ref[...].astype(jnp.float32)
    d_inp = wT.shape[0]
    # Unrolled K-contraction on the VPU: y = sum_k outer(x[:, k], W.T[k, :]).
    acc = x[:, 0:1] * wT[0:1, :]
    for k in range(1, d_inp):
        acc = acc + x[:, k:k + 1] * wT[k:k + 1, :]
    o_ref[...] = acc.astype(o_ref.dtype)


def _tfe_packed_kernel(wp_ref, xp_ref, o_ref):
    # wp_ref: (K, 128)   block-diagonal W.T (K = g*d_inp), resident
    # xp_ref: (bm, K)    g logical rows' features packed per VMEM row (metadata reshape)
    # o_ref : (bm, 128)  g logical rows' d_model outputs packed per 128-lane row
    # One small MXU matmul; the MXU is idle here and the kernel is memory-bound, so the
    # zero-padded columns of wp are free.  f32 accumulation, cast on store.
    o_ref[...] = jnp.dot(xp_ref[...], wp_ref[...],
                         preferred_element_type=jnp.float32).astype(o_ref.dtype)


def time_feature_embedding(x, weight, *, tm=None, force_kernel=False):
    """x: (B, S, d_inp); weight: (d_model, d_inp) (PyTorch nn.Linear layout).
    Returns (B, S, d_model) in x.dtype (in-kernel accumulation is f32)."""
    B, S, d_inp = x.shape
    d_model, d_inp_w = weight.shape
    assert d_inp_w == d_inp, "weight/input feature mismatch"
    M = B * S
    out_dtype = x.dtype

    # Small-problem fast path: custom-call + DMA overhead dominates; XLA's fused einsum wins.
    if not force_kernel and M * d_model * x.dtype.itemsize < (1 << 20):
        return jnp.einsum("bsk,nk->bsn", x, weight,
                          precision=lax.Precision.HIGHEST).astype(out_dtype)

    if tm is None:
        tm = _choose_tm(M, d_model, d_inp)
    else:
        tm = max(128, _round_up(tm, 128))

    footprint = 2 * 4 * tm * (d_model + d_inp) + 4 * 128 * 128
    vmem_limit = int(min(max(footprint + (8 << 20), 16 << 20), 48 << 20))
    cparams = pltpu.CompilerParams(
        dimension_semantics=("parallel",),
        vmem_limit_bytes=vmem_limit,
    )

    g = (128 // d_model) if (d_model < 128 and 128 % d_model == 0) else 1
    use_packed = (g >= 2) and (d_model >= 16) and (M % g == 0) and (tm % g == 0)

    if use_packed:
        # Lane-dense packed output: both reshapes preserve row-major contiguity
        # (metadata only, no extra HBM pass).
        K = g * d_inp
        bm = tm // g
        R = M // g
        xp = x.reshape(R, K)
        wp = _packed_weight(weight, g)
        grid = _cdiv(R, bm)
        yp = pl.pallas_call(
            _tfe_packed_kernel,
            out_shape=jax.ShapeDtypeStruct((R, 128), out_dtype),
            grid_spec=pltpu.PrefetchScalarGridSpec(
                num_scalar_prefetch=0,
                grid=(grid,),
                in_specs=[
                    pl.BlockSpec((K, 128), lambda i: (0, 0)),   # packed weight (resident)
                    pl.BlockSpec((bm, K), lambda i: (i, 0)),    # packed x rows
                ],
                out_specs=pl.BlockSpec((bm, 128), lambda i: (i, 0)),
            ),
            compiler_params=cparams,
        )(wp, xp)
        return yp.reshape(B, S, d_model)

    # Natural layout: lane-dense when d_model % 128 == 0, masked-store fallback otherwise.
    x2d = x.reshape(M, d_inp)                    # metadata-only
    wT = weight.T                                # tiny (d_inp * d_model elements)
    grid = _cdiv(M, tm)
    y = pl.pallas_call(
        _tfe_rows_kernel,
        out_shape=jax.ShapeDtypeStruct((M, d_model), out_dtype),
        grid_spec=pltpu.PrefetchScalarGridSpec(
            num_scalar_prefetch=0,
            grid=(grid,),
            in_specs=[
                pl.BlockSpec((d_inp, d_model), lambda i: (0, 0)),  # W.T (resident)
                pl.BlockSpec((tm, d_inp), lambda i: (i, 0)),       # x rows (natural layout)
            ],
            out_specs=pl.BlockSpec((tm, d_model), lambda i: (i, 0)),
        ),
        compiler_params=cparams,
    )(wT, x2d)
    return y.reshape(B, S, d_model)


if __name__ == "__main__":
    # freq='h' -> d_inp = 4 ; small d_model
    d_inp = 4
    d_model = 32

    key = jax.random.PRNGKey(0)
    kx1, kx2, kx3, kw, kw2 = jax.random.split(key, 5)

    # PyTorch nn.Linear weight layout: (d_model, d_inp)
    weight = jax.random.normal(kw, (d_model, d_inp), dtype=jnp.float32) * (1.0 / (d_inp ** 0.5))

    # Case 1: M % (128 // d_model) == 0 -> packed lane-dense output path (MXU).
    B, S = 2, 8
    x1 = jax.random.normal(kx1, (B, S, d_inp), dtype=jnp.float32)
    out1 = jax.block_until_ready(time_feature_embedding(x1, weight, force_kernel=True))
    ref1 = jnp.einsum("bsk,nk->bsn", x1, weight, precision=lax.Precision.HIGHEST)
    assert out1.shape == (B, S, d_model)
    assert jnp.allclose(out1, ref1, atol=1e-4, rtol=1e-4)

    # Case 2: ragged M = 30 -> natural-layout fallback (partial tile, clipped OOB writes).
    B2, S2 = 3, 10
    x2 = jax.random.normal(kx2, (B2, S2, d_inp), dtype=jnp.float32)
    out2 = jax.block_until_ready(time_feature_embedding(x2, weight, force_kernel=True))
    ref2 = jnp.einsum("bsk,nk->bsn", x2, weight, precision=lax.Precision.HIGHEST)
    assert out2.shape == (B2, S2, d_model)
    assert jnp.allclose(out2, ref2, atol=1e-5, rtol=1e-5)

    # Case 3: d_model multiple of 128 -> natural lane-dense path (unmasked stores).
    d_model3 = 128
    w3 = jax.random.normal(kw2, (d_model3, d_inp), dtype=jnp.float32) * (1.0 / (d_inp ** 0.5))
    x3 = jax.random.normal(kx3, (2, 8, d_inp), dtype=jnp.float32)
    out3 = jax.block_until_ready(time_feature_embedding(x3, w3, force_kernel=True))
    ref3 = jnp.einsum("bsk,nk->bsn", x3, w3, precision=lax.Precision.HIGHEST)
    assert out3.shape == (2, 8, d_model3)
    assert jnp.allclose(out3, ref3, atol=1e-5, rtol=1e-5)

    # Default dispatch on a tiny problem -> fused-einsum fast path.
    out_fast = jax.block_until_ready(time_feature_embedding(x1, weight))
    assert jnp.allclose(out_fast, ref1, atol=1e-5, rtol=1e-5)

    print("KERNEL_OK")
</pallas_src>

<mosaic_0001>
module attributes {stable_mosaic.version = 11 : i64} {
  func.func @_tfe_packed_kernel(%arg0: i32, %arg1: memref<16x128xf32, #tpu.memory_space<vmem>>, %arg2: memref<32x16xf32, #tpu.memory_space<vmem>>, %arg3: memref<32x128xf32, #tpu.memory_space<vmem>>) attributes {dimension_semantics = [#tpu.dimension_semantics<parallel>], iteration_bounds = array<i64: 1>, scalar_prefetch = 0 : i64, scratch_operands = 0 : i64, tpu.core_type = #tpu.core_type<tc>, window_params = [{pipeline_mode = #tpu.pipeline_mode<synchronous>, transform_indices = @transform_0, window_bounds = array<i64: 16, 128>}, {transform_indices = @transform_1, window_bounds = array<i64: 32, 16>}, {transform_indices = @transform_2, window_bounds = array<i64: 32, 128>}]} {
    %c0 = arith.constant 0 : index
    %c0_0 = arith.constant 0 : index
    %0 = vector.load %arg2[%c0, %c0_0] : memref<32x16xf32, #tpu.memory_space<vmem>>, vector<32x16xf32>
    %c0_1 = arith.constant 0 : index
    %c0_2 = arith.constant 0 : index
    %1 = vector.load %arg1[%c0_1, %c0_2] : memref<16x128xf32, #tpu.memory_space<vmem>>, vector<16x128xf32>
    %cst = arith.constant dense<0.000000e+00> : vector<32x128xf32>
    %2 = tpu.matmul %0, %1, %cst {dimension_numbers = #tpu.dot_dimension_numbers<[1], [0], [0], [1], [0, 0, 1, 1], [], []>} : vector<32x16xf32>, vector<16x128xf32>, vector<32x128xf32> -> vector<32x128xf32>
    %c0_3 = arith.constant 0 : index
    %c0_4 = arith.constant 0 : index
    %3 = vector.load %arg3[%c0_3, %c0_4] : memref<32x128xf32, #tpu.memory_space<vmem>>, vector<32x128xf32>
    tpu.vector_store %arg3[%c0_3, %c0_4], %2 {strides = array<i32>} : memref<32x128xf32, #tpu.memory_space<vmem>>, vector<32x128xf32>,
    return
  }
  func.func @transform_0(%arg0: i32) -> (i32, i32) {
    %c0_i32 = arith.constant 0 : i32
    %c0_i32_0 = arith.constant 0 : i32
    %c0_i32_1 = arith.constant 0 : i32
    return %c0_i32, %c0_i32_0 : i32, i32
  }
  func.func @transform_1(%arg0: i32) -> (i32, i32) {
    %c0_i32 = arith.constant 0 : i32
    %c0_i32_0 = arith.constant 0 : i32
    return %arg0, %c0_i32 : i32, i32
  }
  func.func @transform_2(%arg0: i32) -> (i32, i32) {
    %c0_i32 = arith.constant 0 : i32
    %c0_i32_0 = arith.constant 0 : i32
    return %arg0, %c0_i32 : i32, i32
  }
}

</mosaic_0001>

<llo_original>
// kernel: tpu_custom_call.1
$region0: #{tpu_custom_call.1}
  #allocation0 [shape = 'u32[]', space=smem, size = 0x4, offset = 0x4, fixed_abs, tag = 'smem constant byte address 0x4 - core index']
  #allocation1 [shape = 'u32[144,128]{1,0:T(1,128)}', space=vmem, size = 0x12000, scoped, tag = 'internal scratch']
  %s0 = inlined_call_operand.hbm [shape: f32[16,128], index: 0, kind: input, shape index: {}]
  %s1 = inlined_call_operand.hbm [shape: f32[4,16], index: 1, kind: input, shape index: {}]
  %s2 = inlined_call_operand.hbm [shape: f32[4,128], index: 2, kind: output, shape index: {}]
  %s3 = sld [smem:[#allocation0]]
  $region26: #{tpu_custom_call.1} parent=0
    _
  %s5 = ssub.s32 1, %s3
  %s6 = scalar_select 0, %s5, %s3
  $region1: #{tpu_custom_call.1} parent=0
    #allocation2 [shape = 'u8[8192]{0}', space=vmem, size = 0x2000, scoped, tag = 'input window, operand 0, single buffered']
    #allocation3 [shape = 's32[1]{0}', space=sflag, size = 0x4, scoped, tag = 'scoped memory for tpu_custom_call.1']
    #allocation4 [shape = 's32[1]{0}', space=sflag, size = 0x4, scoped, tag = 'scoped memory for tpu_custom_call.1']
    #allocation5 [shape = 'u8[16384]{0}', space=vmem, size = 0x4000, scoped, tag = 'input window, operand 1, single buffered']
    #allocation6 [shape = 's32[1]{0}', space=sflag, size = 0x4, scoped, tag = 'scoped memory for tpu_custom_call.1']
    #allocation7 [shape = 'u8[16384]{0}', space=vmem, size = 0x4000, scoped, tag = 'output window, operand 0, single buffered']
    %7 = vsyncpa [#allocation3], 0
    %8 = vsyncpa [#allocation6], 0
    %9 = vsyncpa [#allocation4], 0
    // Predicated region
    $region2: #{tpu_custom_call.1} parent=1 // pred_check
      _
    $region3: #{tpu_custom_call.1} parent=1 // pred_check_branch
      %11 = sbr.rel (0) target = $region5
    $region4: #{tpu_custom_call.1} parent=1 // pred_region
      %s13 = ssub.s32 256, 256
      %14 = vsyncadd [#allocation3], %s13
      %s15 = sshll.u32 [#allocation2], 4
      %s16 = int_to_ptr.vmem [resolvable:$true] %s15
      %21 = dma.hbm_to_vmem [thread:$0]  %s0, 256, %s16, [#allocation3], 128, 128, 8
    $region5: #{tpu_custom_call.1} parent=1 // pred_fallthru
      _
    // Predicated region
    $region6: #{tpu_custom_call.1} parent=1 // pred_check
      _
    $region7: #{tpu_custom_call.1} parent=1 // pred_check_branch
      %23 = sbr.rel (0) target = $region9
    $region8: #{tpu_custom_call.1} parent=1 // pred_region
      %s25 = ssub.s32 512, 64
      %26 = vsyncadd [#allocation6], %s25
      %s27 = sshll.u32 [#allocation5], 4
      %s28 = int_to_ptr.vmem [resolvable:$true] %s27
      %33 = dma.hbm_to_vmem [thread:$0]  %s1, 64, %s28, [#allocation6], 64, 64, 4
    $region9: #{tpu_custom_call.1} parent=1 // pred_fallthru
      _
    // Predicated region
    $region10: #{tpu_custom_call.1} parent=1 // pred_check
      _
    $region11: #{tpu_custom_call.1} parent=1 // pred_check_branch
      %35 = sbr.rel (0) target = $region13
    $region12: #{tpu_custom_call.1} parent=1 // pred_region
      %36 = dma.done [#allocation3], 256
    $region13: #{tpu_custom_call.1} parent=1 // pred_fallthru
      _
    // Predicated region
    $region14: #{tpu_custom_call.1} parent=1 // pred_check
      _
    $region15: #{tpu_custom_call.1} parent=1 // pred_check_branch
      %38 = sbr.rel (0) target = $region17
    $region16: #{tpu_custom_call.1} parent=1 // pred_region
      %39 = dma.done [#allocation6], 512
    $region17: #{tpu_custom_call.1} parent=1 // pred_fallthru
      _
    %v40 = vld [vmem:[#allocation5] sm:$0xff]
    %v41 = vld [vmem:[#allocation5 + $0x8] sm:$0xff]
    %v42 = vld [vmem:[#allocation5 + $0x10] sm:$0xff]
    %v43 = vld [vmem:[#allocation5 + $0x18] sm:$0xff]
    %v44 = vld [vmem:[#allocation2] sm:$0xff]
    %v45 = vld [vmem:[#allocation2 + $0x8] sm:$0xff]
    %vm46 = vcmask 130048
    %v48 = vsel %vm46, %v40, 0
    %v51 = vsel %vm46, %v41, 0
    %v54 = vsel %vm46, %v42, 0
    %v57 = vsel %vm46, %v43, 0
    %59 = vmatprep.subr.mxu0 0.0
    %60 = vmatpush1.msra.mxu0 %v44
    %61 = vmatprep.subr.mxu0 0.0
    %62 = vmatpush1.msra.mxu0 %v45
    %63 = vmatprep.subr.mxu0 0.0
    %64 = vmatpush1.msra.mxu0 0.0
    %65 = vmatprep.subr.mxu0 0.0
    %66 = vmatpush1.msra.mxu0 0.0
    %67 = vmatprep.subr.mxu0 0.0
    %68 = vmatpush1.msra.mxu0 0.0
    %69 = vmatprep.subr.mxu0 0.0
    %70 = vmatpush1.msra.mxu0 0.0
    %71 = vmatprep.subr.mxu0 0.0
    %72 = vmatpush1.msra.mxu0 0.0
    %73 = vmatprep.subr.mxu0 0.0
    %74 = vmatpush1.msra.mxu0 0.0
    %75 = vmatprep.subr.mxu0 0.0
    %76 = vmatpush1.msra.mxu0 0.0
    %77 = vmatprep.subr.mxu0 0.0
    %78 = vmatpush1.msra.mxu0 0.0
    %79 = vmatprep.subr.mxu0 0.0
    %80 = vmatpush1.msra.mxu0 0.0
    %81 = vmatprep.subr.mxu0 0.0
    %82 = vmatpush1.msra.mxu0 0.0
    %83 = vmatprep.subr.mxu0 0.0
    %84 = vmatpush1.msra.mxu0 0.0
    %85 = vmatprep.subr.mxu0 0.0
    %86 = vmatpush1.msra.mxu0 0.0
    %87 = vmatprep.subr.mxu0 0.0
    %88 = vmatpush1.msra.mxu0 0.0
    %89 = vmatprep.subr.mxu0 0.0
    %90 = vmatpush1.msra.mxu0 0.0
    %91 = vmatprep.subr.mxu0 0.0
    %92 = vmatpush1.msra.mxu0 0.0
    %93 = vmatprep.subr.mxu0 0.0
    %94 = vmatpush1.msra.mxu0 0.0
    %95 = vmatprep.subr.mxu0 0.0
    %96 = vmatpush1.msra.mxu0 0.0
    %97 = vmatprep.subr.mxu0 0.0
    %98 = vmatpush1.msra.mxu0 0.0
    %99 = vmatprep.subr.mxu0 0.0
    %100 = vmatpush1.msra.mxu0 0.0
    %101 = vmatprep.subr.mxu0 0.0
    %102 = vmatpush1.msra.mxu0 0.0
    %103 = vmatprep.subr.mxu0 0.0
    %104 = vmatpush1.msra.mxu0 0.0
    %105 = vmatprep.subr.mxu0 0.0
    %106 = vmatpush1.msra.mxu0 0.0
    %107 = vmatprep.subr.mxu0 0.0
    %108 = vmatpush1.msra.mxu0 0.0
    %109 = vmatprep.subr.mxu0 0.0
    %110 = vmatpush1.msra.mxu0 0.0
    %111 = vmatprep.subr.mxu0 0.0
    %112 = vmatpush1.msra.mxu0 0.0
    %113 = vmatprep.subr.mxu0 0.0
    %114 = vmatpush1.msra.mxu0 0.0
    %115 = vmatprep.subr.mxu0 0.0
    %116 = vmatpush1.msra.mxu0 0.0
    %117 = vmatprep.subr.mxu0 0.0
    %118 = vmatpush1.msra.mxu0 0.0
    %119 = vmatprep.subr.mxu0 0.0
    %120 = vmatpush1.msra.mxu0 0.0
    %121 = vmatprep.subr.mxu0 0.0
    %122 = vmatpush1.msra.mxu0 0.0
    %123 = vmatprep.mubr.f32.mxu0 0.0
    %124 = vmatmul.mubr.f32.gmra.mrb[0].mxu0 %v48
    %v125 = vpop.f32.mrb[0].mxu0
    %v126 = vadd.f32 0.0, %v125
    %v127 = vpop.f32.mrb[0].mxu0
    %128 = vmatprep.mubr.f32.mxu0 0.0
    %129 = vmatmul.mubr.f32.gmra.mrb[0].mxu0 %v51
    %v130 = vpop.f32.mrb[0].mxu0
    %v131 = vadd.f32 0.0, %v130
    %v132 = vpop.f32.mrb[0].mxu0
    %133 = vmatprep.mubr.f32.mxu0 0.0
    %134 = vmatmul.mubr.f32.gmra.mrb[0].mxu0 %v54
    %v135 = vpop.f32.mrb[0].mxu0
    %v136 = vadd.f32 0.0, %v135
    %v137 = vpop.f32.mrb[0].mxu0
    %138 = vmatprep.mubr.f32.mxu0 0.0
    %139 = vmatmul.mubr.f32.gmra.mrb[0].mxu0 %v57
    %v140 = vpop.f32.mrb[0].mxu0
    %v141 = vadd.f32 0.0, %v140
    %v142 = vpop.f32.mrb[0].mxu0
    %143 = vdwg.mxu0
    %144 = vst [vmem:[#allocation7] sm:$0xff] %v126
    %145 = vst [vmem:[#allocation7 + $0x8] sm:$0xff] %v131
    %146 = vst [vmem:[#allocation7 + $0x10] sm:$0xff] %v136
    %147 = vst [vmem:[#allocation7 + $0x18] sm:$0xff] %v141
    // Predicated region
    $region18: #{tpu_custom_call.1} parent=1 // pred_check
      _
    $region19: #{tpu_custom_call.1} parent=1 // pred_check_branch
      %149 = sbr.rel (0) target = $region21
    $region20: #{tpu_custom_call.1} parent=1 // pred_region
      %s151 = ssub.s32 512, 64
      %152 = vsyncadd [#allocation4], %s151
      %s153 = sshll.u32 [#allocation7], 4
      %s154 = int_to_ptr.vmem [resolvable:$true] %s153
      %159 = dma.vmem_to_hbm [thread:$0]  %s154, 64, %s2, [#allocation4], 64, 64, 4
    $region21: #{tpu_custom_call.1} parent=1 // pred_fallthru
      _
    // Predicated region
    $region22: #{tpu_custom_call.1} parent=1 // pred_check
      _
    $region23: #{tpu_custom_call.1} parent=1 // pred_check_branch
      %161 = sbr.rel (0) target = $region25
    $region24: #{tpu_custom_call.1} parent=1 // pred_region
      %162 = dma.done [#allocation4], 512
    $region25: #{tpu_custom_call.1} parent=1 // pred_fallthru
      _
    %163 = vsyncpa [#allocation3], 1
    %164 = vsyncpa [#allocation6], 1
    %165 = vsyncpa [#allocation4], 1

</llo_original>
